<compile_context>
chip_gen: v6e
topology: v6e:2x2x1
jax: 0.10.0
libtpu: 0.0.40
codegen_flags: <defaults>
</compile_context>

<pallas_src>
import functools

import jax
import jax.numpy as jnp
from jax.experimental import pallas as pl
from jax.experimental.pallas import tpu as pltpu


_NEG_SLOPE = 0.01  # torch.nn.LeakyReLU default negative_slope


def _lrelu(x, slope=_NEG_SLOPE):
    return jnp.where(x >= 0, x, slope * x)


def _round_up(x, m):
    return ((x + m - 1) // m) * m


def _pad2d(x, rows, cols):
    r, c = x.shape
    return jnp.pad(x, ((0, rows - r), (0, cols - c)))


# ----------------------------------------------------------------------------
# Kernels
# ----------------------------------------------------------------------------
def _fused_head_kernel(x_ref, wqi_ref, bqi_ref, wh_ref, bh_ref, ws_ref, bs_ref,
                       out_ref, *, e_dim, i_dim, hp):
    """Tiny-K path: lanes [0, e_dim) = pooled question feats, [e_dim, e_dim+i_dim)
    = image embedding; first two Linear layers fused into one block-diagonal
    (128, 2*Hp) matmul."""
    x = x_ref[...].astype(jnp.float32)                    # (BM, 128)
    lane = jax.lax.broadcasted_iota(jnp.int32, x.shape, 1)
    is_q = lane < e_dim

    # Per-segment L2-ish normalization: x / sqrt(sum(x^2) + 1e-6 * real_width)
    # (padded lanes are exact zeros, so sums are unaffected).
    x2 = x * x
    ssq_q = jnp.sum(jnp.where(is_q, x2, 0.0), axis=1, keepdims=True)
    ssq_i = jnp.sum(x2, axis=1, keepdims=True) - ssq_q
    scale = jnp.where(is_q,
                      jax.lax.rsqrt(ssq_q + 1e-6 * e_dim),
                      jax.lax.rsqrt(ssq_i + 1e-6 * i_dim))
    xn = (x * scale).astype(jnp.bfloat16)

    # One matmul produces [q_h | i_h] in the lane dimension.
    y = jnp.dot(xn, wqi_ref[...], preferred_element_type=jnp.float32) + bqi_ref[...]
    y = _lrelu(y)                                         # (BM, 2*Hp)
    combined = y[:, :hp] * y[:, hp:]                      # dropout = identity (eval)
    combined = _lrelu(jnp.dot(combined.astype(jnp.bfloat16), wh_ref[...],
                              preferred_element_type=jnp.float32) + bh_ref[...])
    # dropout = identity (eval)
    out_ref[...] = jnp.dot(combined.astype(jnp.bfloat16), ws_ref[...],
                           preferred_element_type=jnp.float32) + bs_ref[...]


def _split_head_kernel(qf_ref, img_ref, wq_ref, bq_ref, wi_ref, bi_ref,
                       wh_ref, bh_ref, ws_ref, bs_ref, out_ref, *, e_dim, i_dim):
    """General path (E + I > 128): separate question / image matmuls."""
    qf = qf_ref[...].astype(jnp.float32)
    img = img_ref[...].astype(jnp.float32)

    qf = qf * jax.lax.rsqrt(jnp.sum(qf * qf, axis=1, keepdims=True) + 1e-6 * e_dim)
    img = img * jax.lax.rsqrt(jnp.sum(img * img, axis=1, keepdims=True) + 1e-6 * i_dim)

    bf16 = jnp.bfloat16
    q_h = _lrelu(jnp.dot(qf.astype(bf16), wq_ref[...],
                         preferred_element_type=jnp.float32) + bq_ref[...])
    i_h = _lrelu(jnp.dot(img.astype(bf16), wi_ref[...],
                         preferred_element_type=jnp.float32) + bi_ref[...])
    combined = q_h * i_h                                  # dropout = identity (eval)
    combined = _lrelu(jnp.dot(combined.astype(bf16), wh_ref[...],
                              preferred_element_type=jnp.float32) + bh_ref[...])
    out_ref[...] = jnp.dot(combined.astype(bf16), ws_ref[...],
                           preferred_element_type=jnp.float32) + bs_ref[...]


# ----------------------------------------------------------------------------
# Wrapper
# ----------------------------------------------------------------------------
def _choose_block_b(B, block_b):
    bm = min(block_b, _round_up(B, 8))
    # v7x megacore: prefer >= 2 grid steps so "parallel" can shard across TCs.
    if _round_up(B, bm) // bm < 2 and bm > 8:
        bm = max(8, _round_up((bm + 1) // 2, 8))
    return bm


def _vmem_limit_bytes(weight_bytes, in_tile_bytes, out_tile_bytes, interm_bytes):
    # Conservative: count weights as if double-buffered (covers the fallback
    # path), inputs/outputs double-buffered, plus f32 body intermediates.
    need = 2 * weight_bytes + 2 * in_tile_bytes + 2 * out_tile_bytes + interm_bytes
    need = int(need * 1.25) + (4 << 20)                   # compiler-temp headroom
    try:
        cap = int(pltpu.get_tpu_info().vmem_capacity_bytes) - (8 << 20)
    except Exception:
        cap = 56 << 20                                    # safe for v7x (64 MiB/TC)
    return max(16 << 20, min(need, cap))


def baseline_forward(questions_idxs, image_emb, params, *, block_b=512):
    """JAX wrapper: gather + seq pooling in JAX, fused MLP head in Pallas."""
    emb_table = params["emb_table"]                       # (V, E), row 0 == 0
    # NOTE: the reference computes a masked mean but immediately overwrites it
    # with a plain sum over the sequence dimension, so only the sum matters.
    # TODO(synk): fuse this gather+pool into the kernel via scalar prefetch.
    qf = jnp.take(emb_table, questions_idxs, axis=0).sum(axis=1)   # (B, E) f32
    img = image_emb.astype(jnp.float32)

    B, E = qf.shape
    I = img.shape[1]
    H = params["wq"].shape[1]
    C = params["ws"].shape[1]
    Hp, Cp = _round_up(H, 128), _round_up(C, 128)

    BM = _choose_block_b(B, block_b)
    Bp = _round_up(B, BM)
    grid = (Bp // BM,)

    bf16, f32 = jnp.bfloat16, jnp.float32
    fused_first = (E + I) <= 128

    if fused_first:
        # Concatenate qf|img into one 128-lane slab; block-diagonal first weight.
        x_p = _pad2d(jnp.concatenate([qf, img], axis=1), Bp, 128).astype(bf16)
        wqi = jnp.zeros((128, 2 * Hp), f32)
        wqi = wqi.at[:E, :H].set(params["wq"])
        wqi = wqi.at[E:E + I, Hp:Hp + H].set(params["wi"])
        wqi = wqi.astype(bf16)
        bqi = jnp.zeros((1, 2 * Hp), f32)
        bqi = bqi.at[:, :H].set(params["bq"])
        bqi = bqi.at[:, Hp:Hp + H].set(params["bi"])
        wh = _pad2d(params["wh"], Hp, Hp).astype(bf16)
        ws = _pad2d(params["ws"], Hp, Cp).astype(bf16)
        bh = _pad2d(params["bh"], 1, Hp).astype(f32)
        bs = _pad2d(params["bs"], 1, Cp).astype(f32)

        kernel = functools.partial(_fused_head_kernel, e_dim=E, i_dim=I, hp=Hp)
        batch_ins = [(x_p, (BM, 128))]
        resident_ins = [wqi, bqi, wh, bh, ws, bs]
        interm_bytes = 4 * BM * (4 * Hp + Cp + 4 * 128)
    else:
        Ep, Ip = _round_up(E, 128), _round_up(I, 128)
        qf_p = _pad2d(qf, Bp, Ep).astype(bf16)
        img_p = _pad2d(img, Bp, Ip).astype(bf16)
        wq = _pad2d(params["wq"], Ep, Hp).astype(bf16)
        wi = _pad2d(params["wi"], Ip, Hp).astype(bf16)
        bq = _pad2d(params["bq"], 1, Hp).astype(f32)
        bi = _pad2d(params["bi"], 1, Hp).astype(f32)
        wh = _pad2d(params["wh"], Hp, Hp).astype(bf16)
        ws = _pad2d(params["ws"], Hp, Cp).astype(bf16)
        bh = _pad2d(params["bh"], 1, Hp).astype(f32)
        bs = _pad2d(params["bs"], 1, Cp).astype(f32)

        kernel = functools.partial(_split_head_kernel, e_dim=E, i_dim=I)
        batch_ins = [(qf_p, (BM, Ep)), (img_p, (BM, Ip))]
        resident_ins = [wq, bq, wi, bi, wh, bh, ws, bs]
        interm_bytes = 4 * BM * (Ep + Ip + 4 * Hp + Cp)

    weight_bytes = sum(int(a.size) * a.dtype.itemsize for a in resident_ins)
    in_tile_bytes = sum(s[0] * s[1] * 2 for _, s in batch_ins)        # bf16 tiles
    out_tile_bytes = BM * Cp * 4
    vmem_limit = _vmem_limit_bytes(weight_bytes, in_tile_bytes,
                                   out_tile_bytes, interm_bytes)

    def _run(single_buffer_weights):
        if single_buffer_weights:
            def resident_spec(a):
                # Constant block index + single buffer: weights stay VMEM
                # resident across batch tiles with no wasted second buffer.
                return pl.BlockSpec(a.shape, lambda b: (0, 0),
                                    pipeline_mode=pl.Buffered(1))
        else:
            def resident_spec(a):
                return pl.BlockSpec(a.shape, lambda b: (0, 0))

        in_specs = ([pl.BlockSpec(shape, lambda b: (b, 0)) for _, shape in batch_ins]
                    + [resident_spec(a) for a in resident_ins])
        return pl.pallas_call(
            kernel,
            out_shape=jax.ShapeDtypeStruct((Bp, Cp), jnp.float32),
            grid=grid,
            in_specs=in_specs,
            out_specs=pl.BlockSpec((BM, Cp), lambda b: (b, 0)),
            compiler_params=pltpu.CompilerParams(
                dimension_semantics=("parallel",),
                vmem_limit_bytes=vmem_limit,
            ),
        )(*[a for a, _ in batch_ins], *resident_ins)

    try:
        out = _run(True)
    except Exception:
        # Fallback if this jax build rejects pipeline_mode=pl.Buffered(1).
        out = _run(False)

    return out[:B, :C]


# ----------------------------------------------------------------------------
# Params init + pure-JAX reference
# ----------------------------------------------------------------------------
def init_params(key, vocab_size, emb_size, image_emb_size, hidden_size, n_classes):
    ks = jax.random.split(key, 9)
    emb_table = 0.02 * jax.random.normal(ks[0], (vocab_size, emb_size), jnp.float32)
    emb_table = emb_table.at[0].set(0.0)                  # padding_idx = 0

    def linear(kw, kb, fan_in, fan_out):
        bound = 1.0 / jnp.sqrt(fan_in)
        w = jax.random.uniform(kw, (fan_in, fan_out), jnp.float32, -bound, bound)
        b = jax.random.uniform(kb, (1, fan_out), jnp.float32, -bound, bound)
        return w, b

    wq, bq = linear(ks[1], ks[2], emb_size, hidden_size)
    wi, bi = linear(ks[3], ks[4], image_emb_size, hidden_size)
    wh, bh = linear(ks[5], ks[6], hidden_size, hidden_size)
    ws, bs = linear(ks[7], ks[8], hidden_size, n_classes)
    return dict(emb_table=emb_table, wq=wq, bq=bq, wi=wi, bi=bi,
                wh=wh, bh=bh, ws=ws, bs=bs)


def reference_forward(questions_idxs, image_emb, params):
    """Pure-JAX reference mirroring the PyTorch forward (eval mode) with the
    kernel's precision choices (bf16-streamed activations / bf16 weights,
    f32 normalization and accumulation)."""
    qemb = jnp.take(params["emb_table"], questions_idxs, axis=0)
    qf = jnp.sum(qemb, axis=1)
    qf = qf.astype(jnp.bfloat16).astype(jnp.float32)
    img = image_emb.astype(jnp.bfloat16).astype(jnp.float32)
    E, I = qf.shape[1], img.shape[1]
    qf = qf / jnp.sqrt(jnp.sum(qf * qf, axis=1, keepdims=True) + 1e-6 * E)
    img = img / jnp.sqrt(jnp.sum(img * img, axis=1, keepdims=True) + 1e-6 * I)

    def dot_bf16(x, w):
        return jnp.dot(x.astype(jnp.bfloat16), w.astype(jnp.bfloat16),
                       preferred_element_type=jnp.float32)

    q_h = _lrelu(dot_bf16(qf, params["wq"]) + params["bq"])
    i_h = _lrelu(dot_bf16(img, params["wi"]) + params["bi"])
    c = q_h * i_h
    c = _lrelu(dot_bf16(c, params["wh"]) + params["bh"])
    return dot_bf16(c, params["ws"]) + params["bs"]


# ----------------------------------------------------------------------------
# Demo / self-test
# ----------------------------------------------------------------------------
if __name__ == "__main__":
    def run_case(B, S, VOCAB, E, IMG, H, C, atol):
        key = jax.random.PRNGKey(0)
        kp, kq, ki = jax.random.split(key, 3)
        params = init_params(kp, VOCAB, E, IMG, H, C)
        questions_idxs = jax.random.randint(kq, (B, S), 0, VOCAB, dtype=jnp.int32)
        image_emb = jax.random.normal(ki, (B, IMG), jnp.float32)

        logits = jax.block_until_ready(
            baseline_forward(questions_idxs, image_emb, params))
        ref = reference_forward(questions_idxs, image_emb, params)
        assert logits.shape == (B, C), logits.shape
        assert jnp.allclose(logits, ref, atol=atol, rtol=atol), (logits, ref)

    # Case 1: demo shapes -> fused first-layer path (E + I <= 128).
    run_case(B=2, S=8, VOCAB=50, E=32, IMG=32, H=32, C=4, atol=2e-3)
    # Case 2: wider features -> general two-matmul path (E + I > 128).
    run_case(B=4, S=5, VOCAB=40, E=150, IMG=70, H=40, C=6, atol=2e-3)

    print("KERNEL_OK")
</pallas_src>

<mosaic_0001>
module attributes {stable_mosaic.version = 11 : i64} {
  func.func @_fused_head_kernel(%arg0: i32, %arg1: memref<8x128xbf16, #tpu.memory_space<vmem>>, %arg2: memref<128x256xbf16, #tpu.memory_space<vmem>>, %arg3: memref<1x256xf32, #tpu.memory_space<vmem>>, %arg4: memref<128x128xbf16, #tpu.memory_space<vmem>>, %arg5: memref<1x128xf32, #tpu.memory_space<vmem>>, %arg6: memref<128x128xbf16, #tpu.memory_space<vmem>>, %arg7: memref<1x128xf32, #tpu.memory_space<vmem>>, %arg8: memref<8x128xf32, #tpu.memory_space<vmem>>) attributes {dimension_semantics = [#tpu.dimension_semantics<parallel>], iteration_bounds = array<i64: 1>, scalar_prefetch = 0 : i64, scratch_operands = 0 : i64, tpu.core_type = #tpu.core_type<tc>, window_params = [{transform_indices = @transform_0, window_bounds = array<i64: 8, 128>}, {pipeline_mode = #tpu.pipeline_mode<synchronous>, transform_indices = @transform_1, window_bounds = array<i64: 128, 256>}, {pipeline_mode = #tpu.pipeline_mode<synchronous>, transform_indices = @transform_2, window_bounds = array<i64: 1, 256>}, {pipeline_mode = #tpu.pipeline_mode<synchronous>, transform_indices = @transform_3, window_bounds = array<i64: 128, 128>}, {pipeline_mode = #tpu.pipeline_mode<synchronous>, transform_indices = @transform_4, window_bounds = array<i64: 1, 128>}, {pipeline_mode = #tpu.pipeline_mode<synchronous>, transform_indices = @transform_5, window_bounds = array<i64: 128, 128>}, {pipeline_mode = #tpu.pipeline_mode<synchronous>, transform_indices = @transform_6, window_bounds = array<i64: 1, 128>}, {transform_indices = @transform_7, window_bounds = array<i64: 8, 128>}]} {
    %c0 = arith.constant 0 : index
    %c0_0 = arith.constant 0 : index
    %0 = vector.load %arg1[%c0, %c0_0] : memref<8x128xbf16, #tpu.memory_space<vmem>>, vector<8x128xbf16>
    %1 = arith.extf %0 : vector<8x128xbf16> to vector<8x128xf32>
    %2 = tpu.iota {dimensions = array<i32: 1>} : vector<8x128xi32>
    %c32_i32 = arith.constant 32 : i32
    %3 = vector.broadcast %c32_i32 : i32 to vector<8x128xi32>
    %4 = arith.cmpi slt, %2, %3 : vector<8x128xi32>
    %5 = arith.mulf %1, %1 : vector<8x128xf32>
    %cst = arith.constant 0.000000e+00 : f32
    %6 = vector.broadcast %cst : f32 to vector<8x128xf32>
    %7 = arith.select %4, %5, %6 : vector<8x128xi1>, vector<8x128xf32>
    %cst_1 = arith.constant dense<0.000000e+00> : vector<8xf32>
    %8 = vector.multi_reduction <add>, %7, %cst_1 [1] : vector<8x128xf32> to vector<8xf32>
    %9 = vector.shape_cast %8 : vector<8xf32> to vector<8x1xf32>
    %cst_2 = arith.constant dense<0.000000e+00> : vector<8xf32>
    %10 = vector.multi_reduction <add>, %5, %cst_2 [1] : vector<8x128xf32> to vector<8xf32>
    %11 = vector.shape_cast %10 : vector<8xf32> to vector<8x1xf32>
    %12 = arith.subf %11, %9 : vector<8x1xf32>
    %cst_3 = arith.constant 3.200000e-05 : f32
    %13 = vector.broadcast %cst_3 : f32 to vector<8x1xf32>
    %14 = arith.addf %9, %13 : vector<8x1xf32>
    %15 = math.rsqrt %14 : vector<8x1xf32>
    %cst_4 = arith.constant 3.200000e-05 : f32
    %16 = vector.broadcast %cst_4 : f32 to vector<8x1xf32>
    %17 = arith.addf %12, %16 : vector<8x1xf32>
    %18 = math.rsqrt %17 : vector<8x1xf32>
    %19 = vector.shape_cast %15 : vector<8x1xf32> to vector<8x1xf32>
    %20 = vector.broadcast %19 : vector<8x1xf32> to vector<8x128xf32>
    %21 = vector.shape_cast %18 : vector<8x1xf32> to vector<8x1xf32>
    %22 = vector.broadcast %21 : vector<8x1xf32> to vector<8x128xf32>
    %23 = arith.select %4, %20, %22 : vector<8x128xi1>, vector<8x128xf32>
    %24 = arith.mulf %1, %23 : vector<8x128xf32>
    %25 = arith.truncf %24 : vector<8x128xf32> to vector<8x128xbf16>
    %c0_5 = arith.constant 0 : index
    %c0_6 = arith.constant 0 : index
    %26 = vector.load %arg2[%c0_5, %c0_6] : memref<128x256xbf16, #tpu.memory_space<vmem>>, vector<128x256xbf16>
    %cst_7 = arith.constant dense<0.000000e+00> : vector<8x256xf32>
    %27 = tpu.matmul %25, %26, %cst_7 {dimension_numbers = #tpu.dot_dimension_numbers<[1], [0], [0], [1], [0, 0, 1, 1], [], []>} : vector<8x128xbf16>, vector<128x256xbf16>, vector<8x256xf32> -> vector<8x256xf32>
    %c0_8 = arith.constant 0 : index
    %c0_9 = arith.constant 0 : index
    %28 = vector.load %arg3[%c0_8, %c0_9] : memref<1x256xf32, #tpu.memory_space<vmem>>, vector<1x256xf32>
    %29 = vector.broadcast %28 : vector<1x256xf32> to vector<8x256xf32>
    %30 = arith.addf %27, %29 : vector<8x256xf32>
    %cst_10 = arith.constant 0.000000e+00 : f32
    %31 = vector.broadcast %cst_10 : f32 to vector<8x256xf32>
    %32 = arith.cmpf oge, %30, %31 : vector<8x256xf32>
    %cst_11 = arith.constant 0.00999999977 : f32
    %33 = vector.broadcast %cst_11 : f32 to vector<8x256xf32>
    %34 = arith.mulf %33, %30 : vector<8x256xf32>
    %35 = arith.select %32, %30, %34 : vector<8x256xi1>, vector<8x256xf32>
    %36 = vector.extract_strided_slice %35 {offsets = [0, 0], sizes = [8, 128], strides = [1, 1]} : vector<8x256xf32> to vector<8x128xf32>
    %37 = vector.extract_strided_slice %35 {offsets = [0, 128], sizes = [8, 128], strides = [1, 1]} : vector<8x256xf32> to vector<8x128xf32>
    %38 = arith.mulf %36, %37 : vector<8x128xf32>
    %39 = arith.truncf %38 : vector<8x128xf32> to vector<8x128xbf16>
    %c0_12 = arith.constant 0 : index
    %c0_13 = arith.constant 0 : index
    %40 = vector.load %arg4[%c0_12, %c0_13] : memref<128x128xbf16, #tpu.memory_space<vmem>>, vector<128x128xbf16>
    %cst_14 = arith.constant dense<0.000000e+00> : vector<8x128xf32>
    %41 = tpu.matmul %39, %40, %cst_14 {dimension_numbers = #tpu.dot_dimension_numbers<[1], [0], [0], [1], [0, 0, 1, 1], [], []>} : vector<8x128xbf16>, vector<128x128xbf16>, vector<8x128xf32> -> vector<8x128xf32>
    %c0_15 = arith.constant 0 : index
    %c0_16 = arith.constant 0 : index
    %42 = vector.load %arg5[%c0_15, %c0_16] : memref<1x128xf32, #tpu.memory_space<vmem>>, vector<1x128xf32>
    %43 = vector.broadcast %42 : vector<1x128xf32> to vector<8x128xf32>
    %44 = arith.addf %41, %43 : vector<8x128xf32>
    %cst_17 = arith.constant 0.000000e+00 : f32
    %45 = vector.broadcast %cst_17 : f32 to vector<8x128xf32>
    %46 = arith.cmpf oge, %44, %45 : vector<8x128xf32>
    %cst_18 = arith.constant 0.00999999977 : f32
    %47 = vector.broadcast %cst_18 : f32 to vector<8x128xf32>
    %48 = arith.mulf %47, %44 : vector<8x128xf32>
    %49 = arith.select %46, %44, %48 : vector<8x128xi1>, vector<8x128xf32>
    %50 = arith.truncf %49 : vector<8x128xf32> to vector<8x128xbf16>
    %c0_19 = arith.constant 0 : index
    %c0_20 = arith.constant 0 : index
    %51 = vector.load %arg6[%c0_19, %c0_20] : memref<128x128xbf16, #tpu.memory_space<vmem>>, vector<128x128xbf16>
    %cst_21 = arith.constant dense<0.000000e+00> : vector<8x128xf32>
    %52 = tpu.matmul %50, %51, %cst_21 {dimension_numbers = #tpu.dot_dimension_numbers<[1], [0], [0], [1], [0, 0, 1, 1], [], []>} : vector<8x128xbf16>, vector<128x128xbf16>, vector<8x128xf32> -> vector<8x128xf32>
    %c0_22 = arith.constant 0 : index
    %c0_23 = arith.constant 0 : index
    %53 = vector.load %arg7[%c0_22, %c0_23] : memref<1x128xf32, #tpu.memory_space<vmem>>, vector<1x128xf32>
    %54 = vector.broadcast %53 : vector<1x128xf32> to vector<8x128xf32>
    %55 = arith.addf %52, %54 : vector<8x128xf32>
    %c0_24 = arith.constant 0 : index
    %c0_25 = arith.constant 0 : index
    %56 = vector.load %arg8[%c0_24, %c0_25] : memref<8x128xf32, #tpu.memory_space<vmem>>, vector<8x128xf32>
    tpu.vector_store %arg8[%c0_24, %c0_25], %55 {strides = array<i32>} : memref<8x128xf32, #tpu.memory_space<vmem>>, vector<8x128xf32>,
    return
  }
  func.func @transform_0(%arg0: i32) -> (i32, i32) {
    %c0_i32 = arith.constant 0 : i32
    %c0_i32_0 = arith.constant 0 : i32
    return %arg0, %c0_i32 : i32, i32
  }
  func.func @transform_1(%arg0: i32) -> (i32, i32) {
    %c0_i32 = arith.constant 0 : i32
    %c0_i32_0 = arith.constant 0 : i32
    %c0_i32_1 = arith.constant 0 : i32
    return %c0_i32, %c0_i32_0 : i32, i32
  }
  func.func @transform_2(%arg0: i32) -> (i32, i32) {
    %c0_i32 = arith.constant 0 : i32
    %c0_i32_0 = arith.constant 0 : i32
    %c0_i32_1 = arith.constant 0 : i32
    return %c0_i32, %c0_i32_0 : i32, i32
  }
  func.func @transform_3(%arg0: i32) -> (i32, i32) {
    %c0_i32 = arith.constant 0 : i32
    %c0_i32_0 = arith.constant 0 : i32
    %c0_i32_1 = arith.constant 0 : i32
    return %c0_i32, %c0_i32_0 : i32, i32
  }
  func.func @transform_4(%arg0: i32) -> (i32, i32) {
    %c0_i32 = arith.constant 0 : i32
    %c0_i32_0 = arith.constant 0 : i32
    %c0_i32_1 = arith.constant 0 : i32
    return %c0_i32, %c0_i32_0 : i32, i32
  }
  func.func @transform_5(%arg0: i32) -> (i32, i32) {
    %c0_i32 = arith.constant 0 : i32
    %c0_i32_0 = arith.constant 0 : i32
    %c0_i32_1 = arith.constant 0 : i32
    return %c0_i32, %c0_i32_0 : i32, i32
  }
  func.func @transform_6(%arg0: i32) -> (i32, i32) {
    %c0_i32 = arith.constant 0 : i32
    %c0_i32_0 = arith.constant 0 : i32
    %c0_i32_1 = arith.constant 0 : i32
    return %c0_i32, %c0_i32_0 : i32, i32
  }
  func.func @transform_7(%arg0: i32) -> (i32, i32) {
    %c0_i32 = arith.constant 0 : i32
    %c0_i32_0 = arith.constant 0 : i32
    return %arg0, %c0_i32 : i32, i32
  }
}

module attributes {stable_mosaic.version = 11 : i64} {
  func.func @_fused_head_kernel(%arg0: i32, %arg1: memref<8x128xbf16, #tpu.memory_space<vmem>>, %arg2: memref<128x256xbf16, #tpu.memory_space<vmem>>, %arg3: memref<1x256xf32, #tpu.memory_space<vmem>>, %arg4: memref<128x128xbf16, #tpu.memory_space<vmem>>, %arg5: memref<1x128xf32, #tpu.memory_space<vmem>>, %arg6: memref<128x128xbf16, #tpu.memory_space<vmem>>, %arg7: memref<1x128xf32, #tpu.memory_space<vmem>>, %arg8: memref<8x128xf32, #tpu.memory_space<vmem>>) attributes {dimension_semantics = [#tpu.dimension_semantics<parallel>], iteration_bounds = array<i64: 1>, scalar_prefetch = 0 : i64, scratch_operands = 0 : i64, tpu.core_type = #tpu.core_type<tc>, window_params = [{transform_indices = @transform_0, window_bounds = array<i64: 8, 128>}, {pipeline_mode = #tpu.pipeline_mode<synchronous>, transform_indices = @transform_1, window_bounds = array<i64: 128, 256>}, {pipeline_mode = #tpu.pipeline_mode<synchronous>, transform_indices = @transform_2, window_bounds = array<i64: 1, 256>}, {pipeline_mode = #tpu.pipeline_mode<synchronous>, transform_indices = @transform_3, window_bounds = array<i64: 128, 128>}, {pipeline_mode = #tpu.pipeline_mode<synchronous>, transform_indices = @transform_4, window_bounds = array<i64: 1, 128>}, {pipeline_mode = #tpu.pipeline_mode<synchronous>, transform_indices = @transform_5, window_bounds = array<i64: 128, 128>}, {pipeline_mode = #tpu.pipeline_mode<synchronous>, transform_indices = @transform_6, window_bounds = array<i64: 1, 128>}, {transform_indices = @transform_7, window_bounds = array<i64: 8, 128>}]} {
    %c0 = arith.constant 0 : index
    %c0_0 = arith.constant 0 : index
    %0 = vector.load %arg1[%c0, %c0_0] : memref<8x128xbf16, #tpu.memory_space<vmem>>, vector<8x128xbf16>
    %1 = arith.extf %0 : vector<8x128xbf16> to vector<8x128xf32>
    %2 = tpu.iota {dimensions = array<i32: 1>} : vector<8x128xi32>
    %c32_i32 = arith.constant 32 : i32
    %3 = vector.broadcast %c32_i32 : i32 to vector<8x128xi32>
    %4 = arith.cmpi slt, %2, %3 : vector<8x128xi32>
    %5 = arith.mulf %1, %1 : vector<8x128xf32>
    %cst = arith.constant 0.000000e+00 : f32
    %6 = vector.broadcast %cst : f32 to vector<8x128xf32>
    %7 = arith.select %4, %5, %6 : vector<8x128xi1>, vector<8x128xf32>
    %cst_1 = arith.constant dense<0.000000e+00> : vector<8xf32>
    %8 = vector.multi_reduction <add>, %7, %cst_1 [1] : vector<8x128xf32> to vector<8xf32>
    %9 = vector.shape_cast %8 : vector<8xf32> to vector<8x1xf32>
    %cst_2 = arith.constant dense<0.000000e+00> : vector<8xf32>
    %10 = vector.multi_reduction <add>, %5, %cst_2 [1] : vector<8x128xf32> to vector<8xf32>
    %11 = vector.shape_cast %10 : vector<8xf32> to vector<8x1xf32>
    %12 = arith.subf %11, %9 : vector<8x1xf32>
    %cst_3 = arith.constant 3.200000e-05 : f32
    %13 = vector.broadcast %cst_3 : f32 to vector<8x1xf32>
    %14 = arith.addf %9, %13 : vector<8x1xf32>
    %15 = math.rsqrt %14 : vector<8x1xf32>
    %cst_4 = arith.constant 3.200000e-05 : f32
    %16 = vector.broadcast %cst_4 : f32 to vector<8x1xf32>
    %17 = arith.addf %12, %16 : vector<8x1xf32>
    %18 = math.rsqrt %17 : vector<8x1xf32>
    %19 = vector.shape_cast %15 : vector<8x1xf32> to vector<8x1xf32>
    %20 = vector.broadcast %19 : vector<8x1xf32> to vector<8x128xf32>
    %21 = vector.shape_cast %18 : vector<8x1xf32> to vector<8x1xf32>
    %22 = vector.broadcast %21 : vector<8x1xf32> to vector<8x128xf32>
    %23 = arith.select %4, %20, %22 : vector<8x128xi1>, vector<8x128xf32>
    %24 = arith.mulf %1, %23 : vector<8x128xf32>
    %25 = arith.truncf %24 : vector<8x128xf32> to vector<8x128xbf16>
    %c0_5 = arith.constant 0 : index
    %c0_6 = arith.constant 0 : index
    %26 = vector.load %arg2[%c0_5, %c0_6] : memref<128x256xbf16, #tpu.memory_space<vmem>>, vector<128x256xbf16>
    %cst_7 = arith.constant dense<0.000000e+00> : vector<8x256xf32>
    %27 = tpu.matmul %25, %26, %cst_7 {dimension_numbers = #tpu.dot_dimension_numbers<[1], [0], [0], [1], [0, 0, 1, 1], [], []>} : vector<8x128xbf16>, vector<128x256xbf16>, vector<8x256xf32> -> vector<8x256xf32>
    %c0_8 = arith.constant 0 : index
    %c0_9 = arith.constant 0 : index
    %28 = vector.load %arg3[%c0_8, %c0_9] : memref<1x256xf32, #tpu.memory_space<vmem>>, vector<1x256xf32>
    %29 = vector.broadcast %28 : vector<1x256xf32> to vector<8x256xf32>
    %30 = arith.addf %27, %29 : vector<8x256xf32>
    %cst_10 = arith.constant 0.000000e+00 : f32
    %31 = vector.broadcast %cst_10 : f32 to vector<8x256xf32>
    %32 = arith.cmpf oge, %30, %31 : vector<8x256xf32>
    %cst_11 = arith.constant 0.00999999977 : f32
    %33 = vector.broadcast %cst_11 : f32 to vector<8x256xf32>
    %34 = arith.mulf %33, %30 : vector<8x256xf32>
    %35 = arith.select %32, %30, %34 : vector<8x256xi1>, vector<8x256xf32>
    %36 = vector.extract_strided_slice %35 {offsets = [0, 0], sizes = [8, 128], strides = [1, 1]} : vector<8x256xf32> to vector<8x128xf32>
    %37 = vector.extract_strided_slice %35 {offsets = [0, 128], sizes = [8, 128], strides = [1, 1]} : vector<8x256xf32> to vector<8x128xf32>
    %38 = arith.mulf %36, %37 : vector<8x128xf32>
    %39 = arith.truncf %38 : vector<8x128xf32> to vector<8x128xbf16>
    %c0_12 = arith.constant 0 : index
    %c0_13 = arith.constant 0 : index
    %40 = vector.load %arg4[%c0_12, %c0_13] : memref<128x128xbf16, #tpu.memory_space<vmem>>, vector<128x128xbf16>
    %cst_14 = arith.constant dense<0.000000e+00> : vector<8x128xf32>
    %41 = tpu.matmul %39, %40, %cst_14 {dimension_numbers = #tpu.dot_dimension_numbers<[1], [0], [0], [1], [0, 0, 1, 1], [], []>} : vector<8x128xbf16>, vector<128x128xbf16>, vector<8x128xf32> -> vector<8x128xf32>
    %c0_15 = arith.constant 0 : index
    %c0_16 = arith.constant 0 : index
    %42 = vector.load %arg5[%c0_15, %c0_16] : memref<1x128xf32, #tpu.memory_space<vmem>>, vector<1x128xf32>
    %43 = vector.broadcast %42 : vector<1x128xf32> to vector<8x128xf32>
    %44 = arith.addf %41, %43 : vector<8x128xf32>
    %cst_17 = arith.constant 0.000000e+00 : f32
    %45 = vector.broadcast %cst_17 : f32 to vector<8x128xf32>
    %46 = arith.cmpf oge, %44, %45 : vector<8x128xf32>
    %cst_18 = arith.constant 0.00999999977 : f32
    %47 = vector.broadcast %cst_18 : f32 to vector<8x128xf32>
    %48 = arith.mulf %47, %44 : vector<8x128xf32>
    %49 = arith.select %46, %44, %48 : vector<8x128xi1>, vector<8x128xf32>
    %50 = arith.truncf %49 : vector<8x128xf32> to vector<8x128xbf16>
    %c0_19 = arith.constant 0 : index
    %c0_20 = arith.constant 0 : index
    %51 = vector.load %arg6[%c0_19, %c0_20] : memref<128x128xbf16, #tpu.memory_space<vmem>>, vector<128x128xbf16>
    %cst_21 = arith.constant dense<0.000000e+00> : vector<8x128xf32>
    %52 = tpu.matmul %50, %51, %cst_21 {dimension_numbers = #tpu.dot_dimension_numbers<[1], [0], [0], [1], [0, 0, 1, 1], [], []>} : vector<8x128xbf16>, vector<128x128xbf16>, vector<8x128xf32> -> vector<8x128xf32>
    %c0_22 = arith.constant 0 : index
    %c0_23 = arith.constant 0 : index
    %53 = vector.load %arg7[%c0_22, %c0_23] : memref<1x128xf32, #tpu.memory_space<vmem>>, vector<1x128xf32>
    %54 = vector.broadcast %53 : vector<1x128xf32> to vector<8x128xf32>
    %55 = arith.addf %52, %54 : vector<8x128xf32>
    %c0_24 = arith.constant 0 : index
    %c0_25 = arith.constant 0 : index
    %56 = vector.load %arg8[%c0_24, %c0_25] : memref<8x128xf32, #tpu.memory_space<vmem>>, vector<8x128xf32>
    tpu.vector_store %arg8[%c0_24, %c0_25], %55 {strides = array<i32>} : memref<8x128xf32, #tpu.memory_space<vmem>>, vector<8x128xf32>,
    return
  }
  func.func @transform_0(%arg0: i32) -> (i32, i32) {
    %c0_i32 = arith.constant 0 : i32
    %c0_i32_0 = arith.constant 0 : i32
    return %arg0, %c0_i32 : i32, i32
  }
  func.func @transform_1(%arg0: i32) -> (i32, i32) {
    %c0_i32 = arith.constant 0 : i32
    %c0_i32_0 = arith.constant 0 : i32
    %c0_i32_1 = arith.constant 0 : i32
    return %c0_i32, %c0_i32_0 : i32, i32
  }
  func.func @transform_2(%arg0: i32) -> (i32, i32) {
    %c0_i32 = arith.constant 0 : i32
    %c0_i32_0 = arith.constant 0 : i32
    %c0_i32_1 = arith.constant 0 : i32
    return %c0_i32, %c0_i32_0 : i32, i32
  }
  func.func @transform_3(%arg0: i32) -> (i32, i32) {
    %c0_i32 = arith.constant 0 : i32
    %c0_i32_0 = arith.constant 0 : i32
    %c0_i32_1 = arith.constant 0 : i32
    return %c0_i32, %c0_i32_0 : i32, i32
  }
  func.func @transform_4(%arg0: i32) -> (i32, i32) {
    %c0_i32 = arith.constant 0 : i32
    %c0_i32_0 = arith.constant 0 : i32
    %c0_i32_1 = arith.constant 0 : i32
    return %c0_i32, %c0_i32_0 : i32, i32
  }
  func.func @transform_5(%arg0: i32) -> (i32, i32) {
    %c0_i32 = arith.constant 0 : i32
    %c0_i32_0 = arith.constant 0 : i32
    %c0_i32_1 = arith.constant 0 : i32
    return %c0_i32, %c0_i32_0 : i32, i32
  }
  func.func @transform_6(%arg0: i32) -> (i32, i32) {
    %c0_i32 = arith.constant 0 : i32
    %c0_i32_0 = arith.constant 0 : i32
    %c0_i32_1 = arith.constant 0 : i32
    return %c0_i32, %c0_i32_0 : i32, i32
  }
  func.func @transform_7(%arg0: i32) -> (i32, i32) {
    %c0_i32 = arith.constant 0 : i32
    %c0_i32_0 = arith.constant 0 : i32
    return %arg0, %c0_i32 : i32, i32
  }
}

</mosaic_0001>

<llo_original>
// kernel: tpu_custom_call.1
$region0: #{tpu_custom_call.1}
  #allocation0 [shape = 'u32[]', space=smem, size = 0x4, offset = 0x4, fixed_abs, tag = 'smem constant byte address 0x4 - core index']
  #allocation1 [shape = 'u32[144,128]{1,0:T(1,128)}', space=vmem, size = 0x12000, scoped, tag = 'internal scratch']
  %s0 = inlined_call_operand.hbm [shape: bf16[8,128], index: 0, kind: input, shape index: {}]
  %s1 = inlined_call_operand.hbm [shape: bf16[128,256], index: 1, kind: input, shape index: {}]
  %s2 = inlined_call_operand.vmem [shape: f32[1,256], index: 2, kind: input, shape index: {}]
  %s3 = inlined_call_operand.hbm [shape: bf16[128,128], index: 3, kind: input, shape index: {}]
  %s4 = inlined_call_operand.vmem [shape: f32[1,128], index: 4, kind: input, shape index: {}]
  %s5 = inlined_call_operand.hbm [shape: bf16[128,128], index: 5, kind: input, shape index: {}]
  %s6 = inlined_call_operand.vmem [shape: f32[1,128], index: 6, kind: input, shape index: {}]
  %s7 = inlined_call_operand.hbm [shape: f32[8,128], index: 7, kind: output, shape index: {}]
  %s8 = sld [smem:[#allocation0]]
  $region54: #{tpu_custom_call.1} parent=0
    _
  %s10 = ssub.s32 1, %s8
  %s11 = scalar_select 0, %s10, %s8
  $region1: #{tpu_custom_call.1} parent=0
    #allocation2 [shape = 'u8[2048]{0}', space=vmem, size = 0x800, scoped, tag = 'input window, operand 0, single buffered']
    #allocation3 [shape = 's32[1]{0}', space=sflag, size = 0x4, scoped, tag = 'scoped memory for tpu_custom_call.1']
    #allocation4 [shape = 's32[1]{0}', space=sflag, size = 0x4, scoped, tag = 'scoped memory for tpu_custom_call.1']
    #allocation5 [shape = 'u8[65536]{0}', space=vmem, size = 0x10000, scoped, tag = 'input window, operand 1, single buffered']
    #allocation6 [shape = 's32[1]{0}', space=sflag, size = 0x4, scoped, tag = 'scoped memory for tpu_custom_call.1']
    #allocation7 [shape = 'u8[32768]{0}', space=vmem, size = 0x8000, scoped, tag = 'input window, operand 3, single buffered']
    #allocation8 [shape = 'u8[32768]{0}', space=vmem, size = 0x8000, scoped, tag = 'input window, operand 5, single buffered']
    #allocation9 [shape = 's32[1]{0}', space=sflag, size = 0x4, scoped, tag = 'scoped memory for tpu_custom_call.1']
    #allocation10 [shape = 'u8[4096]{0}', space=vmem, size = 0x1000, scoped, tag = 'output window, operand 0, single buffered']
    %12 = vsyncpa [#allocation3], 0
    %13 = vsyncpa [#allocation6], 0
    %14 = vsyncpa [#allocation9], 0
    %15 = vsyncpa [#allocation4], 0
    // Predicated region
    $region2: #{tpu_custom_call.1} parent=1 // pred_check
      _
    $region3: #{tpu_custom_call.1} parent=1 // pred_check_branch
      %17 = sbr.rel (0) target = $region5
    $region4: #{tpu_custom_call.1} parent=1 // pred_region
      %s19 = ssub.s32 64, 64
      %20 = vsyncadd [#allocation3], %s19
      %s22 = sshll.u32 [#allocation2], 4
      %s23 = int_to_ptr.vmem [resolvable:$true] %s22
      %25 = dma.hbm_to_vmem [thread:$0]  %s0, 64, %s23, [#allocation3]
    $region5: #{tpu_custom_call.1} parent=1 // pred_fallthru
      _
    // Predicated region
    $region6: #{tpu_custom_call.1} parent=1 // pred_check
      _
    $region7: #{tpu_custom_call.1} parent=1 // pred_check_branch
      %27 = sbr.rel (0) target = $region9
    $region8: #{tpu_custom_call.1} parent=1 // pred_region
      %s29 = ssub.s32 2048, 2048
      %30 = vsyncadd [#allocation6], %s29
      %s31 = sshll.u32 [#allocation5], 4
      %s32 = int_to_ptr.vmem [resolvable:$true] %s31
      %37 = dma.hbm_to_vmem [thread:$0]  %s1, 2048, %s32, [#allocation6], 128, 128, 8
    $region9: #{tpu_custom_call.1} parent=1 // pred_fallthru
      _
    // Predicated region
    $region10: #{tpu_custom_call.1} parent=1 // pred_check
      _
    $region11: #{tpu_custom_call.1} parent=1 // pred_check_branch
      %39 = sbr.rel (0) target = $region13
    $region12: #{tpu_custom_call.1} parent=1 // pred_region
      _
    $region13: #{tpu_custom_call.1} parent=1 // pred_fallthru
      _
    // Predicated region
    $region14: #{tpu_custom_call.1} parent=1 // pred_check
      _
    $region15: #{tpu_custom_call.1} parent=1 // pred_check_branch
      %41 = sbr.rel (0) target = $region17
    $region16: #{tpu_custom_call.1} parent=1 // pred_region
      %s43 = ssub.s32 1024, 1024
      %44 = vsyncadd [#allocation6], %s43
      %s45 = sshll.u32 [#allocation7], 4
      %s46 = int_to_ptr.vmem [resolvable:$true] %s45
      %51 = dma.hbm_to_vmem [thread:$0]  %s3, 1024, %s46, [#allocation6], 64, 64, 4
    $region17: #{tpu_custom_call.1} parent=1 // pred_fallthru
      _
    // Predicated region
    $region18: #{tpu_custom_call.1} parent=1 // pred_check
      _
    $region19: #{tpu_custom_call.1} parent=1 // pred_check_branch
      %53 = sbr.rel (0) target = $region21
    $region20: #{tpu_custom_call.1} parent=1 // pred_region
      _
    $region21: #{tpu_custom_call.1} parent=1 // pred_fallthru
      _
    // Predicated region
    $region22: #{tpu_custom_call.1} parent=1 // pred_check
      _
    $region23: #{tpu_custom_call.1} parent=1 // pred_check_branch
      %55 = sbr.rel (0) target = $region25
    $region24: #{tpu_custom_call.1} parent=1 // pred_region
      %s57 = ssub.s32 1024, 1024
      %58 = vsyncadd [#allocation9], %s57
      %s59 = sshll.u32 [#allocation8], 4
      %s60 = int_to_ptr.vmem [resolvable:$true] %s59
      %65 = dma.hbm_to_vmem [thread:$0]  %s5, 1024, %s60, [#allocation9], 64, 64, 4
    $region25: #{tpu_custom_call.1} parent=1 // pred_fallthru
      _
    // Predicated region
    $region26: #{tpu_custom_call.1} parent=1 // pred_check
      _
    $region27: #{tpu_custom_call.1} parent=1 // pred_check_branch
      %67 = sbr.rel (0) target = $region29
    $region28: #{tpu_custom_call.1} parent=1 // pred_region
      _
    $region29: #{tpu_custom_call.1} parent=1 // pred_fallthru
      _
    // Predicated region
    $region30: #{tpu_custom_call.1} parent=1 // pred_check
      _
    $region31: #{tpu_custom_call.1} parent=1 // pred_check_branch
      %69 = sbr.rel (0) target = $region33
    $region32: #{tpu_custom_call.1} parent=1 // pred_region
      %70 = dma.done [#allocation3], 64
    $region33: #{tpu_custom_call.1} parent=1 // pred_fallthru
      _
    // Predicated region
    $region34: #{tpu_custom_call.1} parent=1 // pred_check
      _
    $region35: #{tpu_custom_call.1} parent=1 // pred_check_branch
      %72 = sbr.rel (0) target = $region37
    $region36: #{tpu_custom_call.1} parent=1 // pred_region
      %73 = dma.done [#allocation6], 2048
    $region37: #{tpu_custom_call.1} parent=1 // pred_fallthru
      _
    // Predicated region
    $region38: #{tpu_custom_call.1} parent=1 // pred_check
      _
    $region39: #{tpu_custom_call.1} parent=1 // pred_check_branch
      %75 = sbr.rel (0) target = $region41
    $region40: #{tpu_custom_call.1} parent=1 // pred_region
      %76 = dma.done [#allocation6], 1024
    $region41: #{tpu_custom_call.1} parent=1 // pred_fallthru
      _
    // Predicated region
    $region42: #{tpu_custom_call.1} parent=1 // pred_check
      _
    $region43: #{tpu_custom_call.1} parent=1 // pred_check_branch
      %78 = sbr.rel (0) target = $region45
    $region44: #{tpu_custom_call.1} parent=1 // pred_region
      %79 = dma.done [#allocation9], 1024
    $region45: #{tpu_custom_call.1} parent=1 // pred_fallthru
      _
    %v81 = vld [vmem:[#allocation2] sm:$0xf]
    %v82 = vunpack.c.l.bf16 %v81
    %v83 = vlaneseq
    %v84 = vand.u32 %v83, 127
    %vm85 = vcmp.lt.s32.totalorder %v84, 32
    %v86 = vmul.f32 %v82, %v82
    %v87 = vsel %vm85, %v86, 0.0
    %88 = vadd.xlane.f32.xlu0 %v87
    %v89 = vpop.xlane.xlu0 %88
    %90 = vadd.xlane.f32.xlu0 %v86
    %v91 = vpop.xlane.xlu0 %90
    %v92 = vsub.f32 %v91, %v89
    %v93 = vadd.f32 %v89, 3.2e-05
    %v94 = vrsqrt.pop %v93
    %v95 = vadd.f32 %v92, 3.2e-05
    %v96 = vrsqrt.pop %v95
    %v97 = vsel %vm85, %v94, %v96
    %v98 = vmul.f32 %v82, %v97
    %v99 = vpack.c.bf16 %v98, %v98
    %v100 = vld [vmem:[#allocation5] sm:$0xff]
    %v101 = vld [vmem:[#allocation5 + $0x8] sm:$0xff]
    %v102 = vld [vmem:[#allocation5 + $0x10] sm:$0xff]
    %v103 = vld [vmem:[#allocation5 + $0x18] sm:$0xff]
    %v104 = vld [vmem:[#allocation5 + $0x20] sm:$0xff]
    %v105 = vld [vmem:[#allocation5 + $0x28] sm:$0xff]
    %v106 = vld [vmem:[#allocation5 + $0x30] sm:$0xff]
    %v107 = vld [vmem:[#allocation5 + $0x38] sm:$0xff]
    %v108 = vld [vmem:[#allocation5 + $0x40] sm:$0xff]
    %v109 = vld [vmem:[#allocation5 + $0x48] sm:$0xff]
    %v110 = vld [vmem:[#allocation5 + $0x50] sm:$0xff]
    %v111 = vld [vmem:[#allocation5 + $0x58] sm:$0xff]
    %v112 = vld [vmem:[#allocation5 + $0x60] sm:$0xff]
    %v113 = vld [vmem:[#allocation5 + $0x68] sm:$0xff]
    %v114 = vld [vmem:[#allocation5 + $0x70] sm:$0xff]
    %v115 = vld [vmem:[#allocation5 + $0x78] sm:$0xff]
    %v116 = vld [vmem:[%s2] sm:$0x3]
    %v118 = vlaneseq
    %v119 = vshrl.u32 %v118, 7
    %v120 = vsub.s32 0, %v119
    %v121 = vrot.slane %v116, %v120
    %v122 = vlaneseq
    %v123 = vshrl.u32 %v122, 7
    %v124 = vsub.s32 1, %v123
    %v125 = vrot.slane %v116, %v124
    %v144 = vunpack.c.l.b16 %v100
    %v145 = vunpack.c.h.b16 %v100
    %v146 = vunpack.c.l.b16 %v101
    %v147 = vunpack.c.h.b16 %v101
    %v148 = vunpack.c.l.b16 %v102
    %v149 = vunpack.c.h.b16 %v102
    %v150 = vunpack.c.l.b16 %v103
    %v151 = vunpack.c.h.b16 %v103
    %v152 = vunpack.c.l.b16 %v104
    %v153 = vunpack.c.h.b16 %v104
    %v154 = vunpack.c.l.b16 %v105
    %v155 = vunpack.c.h.b16 %v105
    %v156 = vunpack.c.l.b16 %v106
    %v157 = vunpack.c.h.b16 %v106
    %v158 = vunpack.c.l.b16 %v107
    %v159 = vunpack.c.h.b16 %v107
    %v160 = vunpack.c.l.b16 %v108
    %v161 = vunpack.c.h.b16 %v108
    %v162 = vunpack.c.l.b16 %v109
    %v163 = vunpack.c.h.b16 %v109
    %v164 = vunpack.c.l.b16 %v110
    %v165 = vunpack.c.h.b16 %v110
    %v166 = vunpack.c.l.b16 %v111
    %v167 = vunpack.c.h.b16 %v111
    %v168 = vunpack.c.l.b16 %v112
    %v169 = vunpack.c.h.b16 %v112
    %v170 = vunpack.c.l.b16 %v113
    %v171 = vunpack.c.h.b16 %v113
    %v172 = vunpack.c.l.b16 %v114
    %v173 = vunpack.c.h.b16 %v114
    %v174 = vunpack.c.l.b16 %v115
    %v175 = vunpack.c.h.b16 %v115
    %v176 = vpack.c.b16 %v146, %v144
    %v177 = vpack.c.b16 %v147, %v145
    %v178 = vpack.c.b16 %v150, %v148
    %v179 = vpack.c.b16 %v151, %v149
    %v180 = vpack.c.b16 %v154, %v152
    %v181 = vpack.c.b16 %v155, %v153
    %v182 = vpack.c.b16 %v158, %v156
    %v183 = vpack.c.b16 %v159, %v157
    %v184 = vpack.c.b16 %v162, %v160
    %v185 = vpack.c.b16 %v163, %v161
    %v186 = vpack.c.b16 %v166, %v164
    %v187 = vpack.c.b16 %v167, %v165
    %v188 = vpack.c.b16 %v170, %v168
    %v189 = vpack.c.b16 %v171, %v169
    %v190 = vpack.c.b16 %v174, %v172
    %v191 = vpack.c.b16 %v175, %v173
    %208 = vmatprep.subr.bf16.mxu0 %v191
    %209 = vmatpush1.bf16.msra.mxu0 %v190
    %210 = vmatprep.subr.bf16.mxu0 %v189
    %211 = vmatpush1.bf16.msra.mxu0 %v188
    %212 = vmatprep.subr.bf16.mxu0 %v187
    %213 = vmatpush1.bf16.msra.mxu0 %v186
    %214 = vmatprep.subr.bf16.mxu0 %v185
    %215 = vmatpush1.bf16.msra.mxu0 %v184
    %216 = vmatprep.subr.bf16.mxu0 %v183
    %217 = vmatpush1.bf16.msra.mxu0 %v182
    %218 = vmatprep.subr.bf16.mxu0 %v181
    %219 = vmatpush1.bf16.msra.mxu0 %v180
    %220 = vmatprep.subr.bf16.mxu0 %v179
    %221 = vmatpush1.bf16.msra.mxu0 %v178
    %222 = vmatprep.subr.bf16.mxu0 %v177
    %223 = vmatpush1.bf16.msra.mxu0 %v176
    %224 = vmatprep.subr.bf16.mxu0 0
    %225 = vmatpush2.bf16.msra.mxu0 0
    %226 = vmatprep.subr.bf16.mxu0 0
    %227 = vmatpush2.bf16.msra.mxu0 0
    %228 = vmatprep.subr.bf16.mxu0 0
    %229 = vmatpush2.bf16.msra.mxu0 0
    %230 = vmatprep.subr.bf16.mxu0 0
    %231 = vmatpush2.bf16.msra.mxu0 0
    %232 = vmatprep.subr.bf16.mxu0 0
    %233 = vmatpush2.bf16.msra.mxu0 0
    %234 = vmatprep.subr.bf16.mxu0 0
    %235 = vmatpush2.bf16.msra.mxu0 0
    %236 = vmatprep.subr.bf16.mxu0 0
    %237 = vmatpush2.bf16.msra.mxu0 0
    %238 = vmatprep.subr.bf16.mxu0 0
    %239 = vmatpush2.bf16.msra.mxu0 0
    %240 = vmatprep.mubr.bf16.mxu0 0
    %241 = vmatmul.mubr.bf16.gmra.mxu0 %v99
    %v242 = vpop.f32.mrf.mxu0
    %v243 = vadd.f32 %v121, %v242
    %v244 = vpop.f32.mrf.mxu0
    %v245 = vadd.f32 %v125, %v244
    %v246 = vpop.f32.mrf.mxu0
    %v247 = vpop.f32.mrf.mxu0
    %248 = vdwg.mxu0
    %vm249 = vcmp.ge.f32.partialorder %v243, 0.0
    %vm250 = vcmp.ge.f32.partialorder %v245, 0.0
    %v251 = vmul.f32 %v243, 0.01
    %v252 = vmul.f32 %v245, 0.01
    %v253 = vsel %vm249, %v243, %v251
    %v254 = vsel %vm250, %v245, %v252
    %v255 = vmul.f32 %v253, %v254
    %v256 = vpack.c.bf16 %v255, %v255
    %v257 = vld [vmem:[#allocation7] sm:$0xf]
    %v258 = vld [vmem:[#allocation7 + $0x4] sm:$0xf]
    %v259 = vld [vmem:[#allocation7 + $0x8] sm:$0xf]
    %v260 = vld [vmem:[#allocation7 + $0xc] sm:$0xf]
    %v261 = vld [vmem:[#allocation7 + $0x10] sm:$0xf]
    %v262 = vld [vmem:[#allocation7 + $0x14] sm:$0xf]
    %v263 = vld [vmem:[#allocation7 + $0x18] sm:$0xf]
    %v264 = vld [vmem:[#allocation7 + $0x1c] sm:$0xf]
    %v265 = vld [vmem:[#allocation7 + $0x20] sm:$0xf]
    %v266 = vld [vmem:[#allocation7 + $0x24] sm:$0xf]
    %v267 = vld [vmem:[#allocation7 + $0x28] sm:$0xf]
    %v268 = vld [vmem:[#allocation7 + $0x2c] sm:$0xf]
    %v269 = vld [vmem:[#allocation7 + $0x30] sm:$0xf]
    %v270 = vld [vmem:[#allocation7 + $0x34] sm:$0xf]
    %v271 = vld [vmem:[#allocation7 + $0x38] sm:$0xf]
    %v272 = vld [vmem:[#allocation7 + $0x3c] sm:$0xf]
    %v273 = vld [vmem:[%s4] sm:$0x1]
    %v275 = vlaneseq
    %v276 = vshrl.u32 %v275, 7
    %v277 = vsub.s32 0, %v276
    %v278 = vrot.slane %v273, %v277
    %v296 = vunpack.c.l.b16 %v257
    %v297 = vunpack.c.l.b16 %v258
    %v298 = vunpack.c.l.b16 %v259
    %v299 = vunpack.c.l.b16 %v260
    %v300 = vunpack.c.l.b16 %v261
    %v301 = vunpack.c.l.b16 %v262
    %v302 = vunpack.c.l.b16 %v263
    %v303 = vunpack.c.l.b16 %v264
    %v304 = vunpack.c.l.b16 %v265
    %v305 = vunpack.c.l.b16 %v266
    %v306 = vunpack.c.l.b16 %v267
    %v307 = vunpack.c.l.b16 %v268
    %v308 = vunpack.c.l.b16 %v269
    %v309 = vunpack.c.l.b16 %v270
    %v310 = vunpack.c.l.b16 %v271
    %v311 = vunpack.c.l.b16 %v272
    %v312 = vpack.c.b16 %v297, %v296
    %v313 = vpack.c.b16 %v299, %v298
    %v314 = vpack.c.b16 %v301, %v300
    %v315 = vpack.c.b16 %v303, %v302
    %v316 = vpack.c.b16 %v305, %v304
    %v317 = vpack.c.b16 %v307, %v306
    %v318 = vpack.c.b16 %v309, %v308
    %v319 = vpack.c.b16 %v311, %v310
    %328 = vmatprep.subr.bf16.mxu0 0
    %329 = vmatpush1.bf16.msra.mxu0 %v319
    %330 = vmatprep.subr.bf16.mxu0 0
    %331 = vmatpush1.bf16.msra.mxu0 %v318
    %332 = vmatprep.subr.bf16.mxu0 0
    %333 = vmatpush1.bf16.msra.mxu0 %v317
    %334 = vmatprep.subr.bf16.mxu0 0
    %335 = vmatpush1.bf16.msra.mxu0 %v316
    %336 = vmatprep.subr.bf16.mxu0 0
    %337 = vmatpush1.bf16.msra.mxu0 %v315
    %338 = vmatprep.subr.bf16.mxu0 0
    %339 = vmatpush1.bf16.msra.mxu0 %v314
    %340 = vmatprep.subr.bf16.mxu0 0
    %341 = vmatpush1.bf16.msra.mxu0 %v313
    %342 = vmatprep.subr.bf16.mxu0 0
    %343 = vmatpush1.bf16.msra.mxu0 %v312
    %344 = vmatprep.subr.bf16.mxu0 0
    %345 = vmatpush2.bf16.msra.mxu0 0
    %346 = vmatprep.subr.bf16.mxu0 0
    %347 = vmatpush2.bf16.msra.mxu0 0
    %348 = vmatprep.subr.bf16.mxu0 0
    %349 = vmatpush2.bf16.msra.mxu0 0
    %350 = vmatprep.subr.bf16.mxu0 0
    %351 = vmatpush2.bf16.msra.mxu0 0
    %352 = vmatprep.subr.bf16.mxu0 0
    %353 = vmatpush2.bf16.msra.mxu0 0
    %354 = vmatprep.subr.bf16.mxu0 0
    %355 = vmatpush2.bf16.msra.mxu0 0
    %356 = vmatprep.subr.bf16.mxu0 0
    %357 = vmatpush2.bf16.msra.mxu0 0
    %358 = vmatprep.subr.bf16.mxu0 0
    %359 = vmatpush2.bf16.msra.mxu0 0
    %360 = vmatprep.mubr.bf16.mxu0 0
    %361 = vmatmul.mubr.bf16.gmra.mxu0 %v256
    %v362 = vpop.f32.mrf.mxu0
    %v363 = vadd.f32 %v278, %v362
    %v364 = vpop.f32.mrf.mxu0
    %v365 = vpop.f32.mrf.mxu0
    %v366 = vpop.f32.mrf.mxu0
    %367 = vdwg.mxu0
    %vm368 = vcmp.ge.f32.partialorder %v363, 0.0
    %v369 = vmul.f32 %v363, 0.01
    %v370 = vsel %vm368, %v363, %v369
    %v371 = vpack.c.bf16 %v370, %v370
    %v372 = vld [vmem:[#allocation8] sm:$0xf]
    %v373 = vld [vmem:[#allocation8 + $0x4] sm:$0xf]
    %v374 = vld [vmem:[#allocation8 + $0x8] sm:$0xf]
    %v375 = vld [vmem:[#allocation8 + $0xc] sm:$0xf]
    %v376 = vld [vmem:[#allocation8 + $0x10] sm:$0xf]
    %v377 = vld [vmem:[#allocation8 + $0x14] sm:$0xf]
    %v378 = vld [vmem:[#allocation8 + $0x18] sm:$0xf]
    %v379 = vld [vmem:[#allocation8 + $0x1c] sm:$0xf]
    %v380 = vld [vmem:[#allocation8 + $0x20] sm:$0xf]
    %v381 = vld [vmem:[#allocation8 + $0x24] sm:$0xf]
    %v382 = vld [vmem:[#allocation8 + $0x28] sm:$0xf]
    %v383 = vld [vmem:[#allocation8 + $0x2c] sm:$0xf]
    %v384 = vld [vmem:[#allocation8 + $0x30] sm:$0xf]
    %v385 = vld [vmem:[#allocation8 + $0x34] sm:$0xf]
    %v386 = vld [vmem:[#allocation8 + $0x38] sm:$0xf]
    %v387 = vld [vmem:[#allocation8 + $0x3c] sm:$0xf]
    %v388 = vld [vmem:[%s6] sm:$0x1]
    %v390 = vlaneseq
    %v391 = vshrl.u32 %v390, 7
    %v392 = vsub.s32 0, %v391
    %v393 = vrot.slane %v388, %v392
    %v411 = vunpack.c.l.b16 %v372
    %v412 = vunpack.c.l.b16 %v373
    %v413 = vunpack.c.l.b16 %v374
    %v414 = vunpack.c.l.b16 %v375
    %v415 = vunpack.c.l.b16 %v376
    %v416 = vunpack.c.l.b16 %v377
    %v417 = vunpack.c.l.b16 %v378
    %v418 = vunpack.c.l.b16 %v379
    %v419 = vunpack.c.l.b16 %v380
    %v420 = vunpack.c.l.b16 %v381
    %v421 = vunpack.c.l.b16 %v382
    %v422 = vunpack.c.l.b16 %v383
    %v423 = vunpack.c.l.b16 %v384
    %v424 = vunpack.c.l.b16 %v385
    %v425 = vunpack.c.l.b16 %v386
    %v426 = vunpack.c.l.b16 %v387
    %v427 = vpack.c.b16 %v412, %v411
    %v428 = vpack.c.b16 %v414, %v413
    %v429 = vpack.c.b16 %v416, %v415
    %v430 = vpack.c.b16 %v418, %v417
    %v431 = vpack.c.b16 %v420, %v419
    %v432 = vpack.c.b16 %v422, %v421
    %v433 = vpack.c.b16 %v424, %v423
    %v434 = vpack.c.b16 %v426, %v425
    %443 = vmatprep.subr.bf16.mxu0 0
    %444 = vmatpush1.bf16.msra.mxu0 %v434
    %445 = vmatprep.subr.bf16.mxu0 0
    %446 = vmatpush1.bf16.msra.mxu0 %v433
    %447 = vmatprep.subr.bf16.mxu0 0
    %448 = vmatpush1.bf16.msra.mxu0 %v432
    %449 = vmatprep.subr.bf16.mxu0 0
    %450 = vmatpush1.bf16.msra.mxu0 %v431
    %451 = vmatprep.subr.bf16.mxu0 0
    %452 = vmatpush1.bf16.msra.mxu0 %v430
    %453 = vmatprep.subr.bf16.mxu0 0
    %454 = vmatpush1.bf16.msra.mxu0 %v429
    %455 = vmatprep.subr.bf16.mxu0 0
    %456 = vmatpush1.bf16.msra.mxu0 %v428
    %457 = vmatprep.subr.bf16.mxu0 0
    %458 = vmatpush1.bf16.msra.mxu0 %v427
    %459 = vmatprep.subr.bf16.mxu0 0
    %460 = vmatpush2.bf16.msra.mxu0 0
    %461 = vmatprep.subr.bf16.mxu0 0
    %462 = vmatpush2.bf16.msra.mxu0 0
    %463 = vmatprep.subr.bf16.mxu0 0
    %464 = vmatpush2.bf16.msra.mxu0 0
    %465 = vmatprep.subr.bf16.mxu0 0
    %466 = vmatpush2.bf16.msra.mxu0 0
    %467 = vmatprep.subr.bf16.mxu0 0
    %468 = vmatpush2.bf16.msra.mxu0 0
    %469 = vmatprep.subr.bf16.mxu0 0
    %470 = vmatpush2.bf16.msra.mxu0 0
    %471 = vmatprep.subr.bf16.mxu0 0
    %472 = vmatpush2.bf16.msra.mxu0 0
    %473 = vmatprep.subr.bf16.mxu0 0
    %474 = vmatpush2.bf16.msra.mxu0 0
    %475 = vmatprep.mubr.bf16.mxu0 0
    %476 = vmatmul.mubr.bf16.gmra.mxu0 %v371
    %v477 = vpop.f32.mrf.mxu0
    %v478 = vadd.f32 %v393, %v477
    %v479 = vpop.f32.mrf.mxu0
    %v480 = vpop.f32.mrf.mxu0
    %v481 = vpop.f32.mrf.mxu0
    %482 = vdwg.mxu0
    %483 = vst [vmem:[#allocation10] sm:$0xff] %v478
    // Predicated region
    $region46: #{tpu_custom_call.1} parent=1 // pred_check
      _
    $region47: #{tpu_custom_call.1} parent=1 // pred_check_branch
      %485 = sbr.rel (0) target = $region49
    $region48: #{tpu_custom_call.1} parent=1 // pred_region
      %s487 = ssub.s32 128, 128
      %488 = vsyncadd [#allocation4], %s487
      %s490 = sshll.u32 [#allocation10], 4
      %s491 = int_to_ptr.vmem [resolvable:$true] %s490
      %493 = dma.vmem_to_hbm [thread:$0]  %s491, 128, %s7, [#allocation4]
    $region49: #{tpu_custom_call.1} parent=1 // pred_fallthru
      _
    // Predicated region
    $region50: #{tpu_custom_call.1} parent=1 // pred_check
      _
    $region51: #{tpu_custom_call.1} parent=1 // pred_check_branch
      %495 = sbr.rel (0) target = $region53
    $region52: #{tpu_custom_call.1} parent=1 // pred_region
      %496 = dma.done [#allocation4], 128
    $region53: #{tpu_custom_call.1} parent=1 // pred_fallthru
      _
    %497 = vsyncpa [#allocation3], 1
    %498 = vsyncpa [#allocation6], 1
    %499 = vsyncpa [#allocation9], 1
    %500 = vsyncpa [#allocation4], 1

// kernel: tpu_custom_call.1
$region0: #{tpu_custom_call.1}
  #allocation0 [shape = 'u32[]', space=smem, size = 0x4, offset = 0x4, fixed_abs, tag = 'smem constant byte address 0x4 - core index']
  #allocation1 [shape = 'u32[144,128]{1,0:T(1,128)}', space=vmem, size = 0x12000, scoped, tag = 'internal scratch']
  %s0 = inlined_call_operand.hbm [shape: bf16[8,128], index: 0, kind: input, shape index: {}]
  %s1 = inlined_call_operand.hbm [shape: bf16[128,256], index: 1, kind: input, shape index: {}]
  %s2 = inlined_call_operand.vmem [shape: f32[1,256], index: 2, kind: input, shape index: {}]
  %s3 = inlined_call_operand.hbm [shape: bf16[128,128], index: 3, kind: input, shape index: {}]
  %s4 = inlined_call_operand.vmem [shape: f32[1,128], index: 4, kind: input, shape index: {}]
  %s5 = inlined_call_operand.hbm [shape: bf16[128,128], index: 5, kind: input, shape index: {}]
  %s6 = inlined_call_operand.vmem [shape: f32[1,128], index: 6, kind: input, shape index: {}]
  %s7 = inlined_call_operand.hbm [shape: f32[8,128], index: 7, kind: output, shape index: {}]
  %s8 = sld [smem:[#allocation0]]
  $region54: #{tpu_custom_call.1} parent=0
    _
  %s10 = ssub.s32 1, %s8
  %s11 = scalar_select 0, %s10, %s8
  $region1: #{tpu_custom_call.1} parent=0
    #allocation2 [shape = 'u8[2048]{0}', space=vmem, size = 0x800, scoped, tag = 'input window, operand 0, single buffered']
    #allocation3 [shape = 's32[1]{0}', space=sflag, size = 0x4, scoped, tag = 'scoped memory for tpu_custom_call.1']
    #allocation4 [shape = 's32[1]{0}', space=sflag, size = 0x4, scoped, tag = 'scoped memory for tpu_custom_call.1']
    #allocation5 [shape = 'u8[65536]{0}', space=vmem, size = 0x10000, scoped, tag = 'input window, operand 1, single buffered']
    #allocation6 [shape = 's32[1]{0}', space=sflag, size = 0x4, scoped, tag = 'scoped memory for tpu_custom_call.1']
    #allocation7 [shape = 'u8[32768]{0}', space=vmem, size = 0x8000, scoped, tag = 'input window, operand 3, single buffered']
    #allocation8 [shape = 'u8[32768]{0}', space=vmem, size = 0x8000, scoped, tag = 'input window, operand 5, single buffered']
    #allocation9 [shape = 's32[1]{0}', space=sflag, size = 0x4, scoped, tag = 'scoped memory for tpu_custom_call.1']
    #allocation10 [shape = 'u8[4096]{0}', space=vmem, size = 0x1000, scoped, tag = 'output window, operand 0, single buffered']
    %12 = vsyncpa [#allocation3], 0
    %13 = vsyncpa [#allocation6], 0
    %14 = vsyncpa [#allocation9], 0
    %15 = vsyncpa [#allocation4], 0
    // Predicated region
    $region2: #{tpu_custom_call.1} parent=1 // pred_check
      _
    $region3: #{tpu_custom_call.1} parent=1 // pred_check_branch
      %17 = sbr.rel (0) target = $region5
    $region4: #{tpu_custom_call.1} parent=1 // pred_region
      %s19 = ssub.s32 64, 64
      %20 = vsyncadd [#allocation3], %s19
      %s22 = sshll.u32 [#allocation2], 4
      %s23 = int_to_ptr.vmem [resolvable:$true] %s22
      %25 = dma.hbm_to_vmem [thread:$0]  %s0, 64, %s23, [#allocation3]
    $region5: #{tpu_custom_call.1} parent=1 // pred_fallthru
      _
    // Predicated region
    $region6: #{tpu_custom_call.1} parent=1 // pred_check
      _
    $region7: #{tpu_custom_call.1} parent=1 // pred_check_branch
      %27 = sbr.rel (0) target = $region9
    $region8: #{tpu_custom_call.1} parent=1 // pred_region
      %s29 = ssub.s32 2048, 2048
      %30 = vsyncadd [#allocation6], %s29
      %s31 = sshll.u32 [#allocation5], 4
      %s32 = int_to_ptr.vmem [resolvable:$true] %s31
      %37 = dma.hbm_to_vmem [thread:$0]  %s1, 2048, %s32, [#allocation6], 128, 128, 8
    $region9: #{tpu_custom_call.1} parent=1 // pred_fallthru
      _
    // Predicated region
    $region10: #{tpu_custom_call.1} parent=1 // pred_check
      _
    $region11: #{tpu_custom_call.1} parent=1 // pred_check_branch
      %39 = sbr.rel (0) target = $region13
    $region12: #{tpu_custom_call.1} parent=1 // pred_region
      _
    $region13: #{tpu_custom_call.1} parent=1 // pred_fallthru
      _
    // Predicated region
    $region14: #{tpu_custom_call.1} parent=1 // pred_check
      _
    $region15: #{tpu_custom_call.1} parent=1 // pred_check_branch
      %41 = sbr.rel (0) target = $region17
    $region16: #{tpu_custom_call.1} parent=1 // pred_region
      %s43 = ssub.s32 1024, 1024
      %44 = vsyncadd [#allocation6], %s43
      %s45 = sshll.u32 [#allocation7], 4
      %s46 = int_to_ptr.vmem [resolvable:$true] %s45
      %51 = dma.hbm_to_vmem [thread:$0]  %s3, 1024, %s46, [#allocation6], 64, 64, 4
    $region17: #{tpu_custom_call.1} parent=1 // pred_fallthru
      _
    // Predicated region
    $region18: #{tpu_custom_call.1} parent=1 // pred_check
      _
    $region19: #{tpu_custom_call.1} parent=1 // pred_check_branch
      %53 = sbr.rel (0) target = $region21
    $region20: #{tpu_custom_call.1} parent=1 // pred_region
      _
    $region21: #{tpu_custom_call.1} parent=1 // pred_fallthru
      _
    // Predicated region
    $region22: #{tpu_custom_call.1} parent=1 // pred_check
      _
    $region23: #{tpu_custom_call.1} parent=1 // pred_check_branch
      %55 = sbr.rel (0) target = $region25
    $region24: #{tpu_custom_call.1} parent=1 // pred_region
      %s57 = ssub.s32 1024, 1024
      %58 = vsyncadd [#allocation9], %s57
      %s59 = sshll.u32 [#allocation8], 4
      %s60 = int_to_ptr.vmem [resolvable:$true] %s59
      %65 = dma.hbm_to_vmem [thread:$0]  %s5, 1024, %s60, [#allocation9], 64, 64, 4
    $region25: #{tpu_custom_call.1} parent=1 // pred_fallthru
      _
    // Predicated region
    $region26: #{tpu_custom_call.1} parent=1 // pred_check
      _
    $region27: #{tpu_custom_call.1} parent=1 // pred_check_branch
      %67 = sbr.rel (0) target = $region29
    $region28: #{tpu_custom_call.1} parent=1 // pred_region
      _
    $region29: #{tpu_custom_call.1} parent=1 // pred_fallthru
      _
    // Predicated region
    $region30: #{tpu_custom_call.1} parent=1 // pred_check
      _
    $region31: #{tpu_custom_call.1} parent=1 // pred_check_branch
      %69 = sbr.rel (0) target = $region33
    $region32: #{tpu_custom_call.1} parent=1 // pred_region
      %70 = dma.done [#allocation3], 64
    $region33: #{tpu_custom_call.1} parent=1 // pred_fallthru
      _
    // Predicated region
    $region34: #{tpu_custom_call.1} parent=1 // pred_check
      _
    $region35: #{tpu_custom_call.1} parent=1 // pred_check_branch
      %72 = sbr.rel (0) target = $region37
    $region36: #{tpu_custom_call.1} parent=1 // pred_region
      %73 = dma.done [#allocation6], 2048
    $region37: #{tpu_custom_call.1} parent=1 // pred_fallthru
      _
    // Predicated region
    $region38: #{tpu_custom_call.1} parent=1 // pred_check
      _
    $region39: #{tpu_custom_call.1} parent=1 // pred_check_branch
      %75 = sbr.rel (0) target = $region41
    $region40: #{tpu_custom_call.1} parent=1 // pred_region
      %76 = dma.done [#allocation6], 1024
    $region41: #{tpu_custom_call.1} parent=1 // pred_fallthru
      _
    // Predicated region
    $region42: #{tpu_custom_call.1} parent=1 // pred_check
      _
    $region43: #{tpu_custom_call.1} parent=1 // pred_check_branch
      %78 = sbr.rel (0) target = $region45
    $region44: #{tpu_custom_call.1} parent=1 // pred_region
      %79 = dma.done [#allocation9], 1024
    $region45: #{tpu_custom_call.1} parent=1 // pred_fallthru
      _
    %v81 = vld [vmem:[#allocation2] sm:$0xf]
    %v82 = vunpack.c.l.bf16 %v81
    %v83 = vlaneseq
    %v84 = vand.u32 %v83, 127
    %vm85 = vcmp.lt.s32.totalorder %v84, 32
    %v86 = vmul.f32 %v82, %v82
    %v87 = vsel %vm85, %v86, 0.0
    %88 = vadd.xlane.f32.xlu0 %v87
    %v89 = vpop.xlane.xlu0 %88
    %90 = vadd.xlane.f32.xlu0 %v86
    %v91 = vpop.xlane.xlu0 %90
    %v92 = vsub.f32 %v91, %v89
    %v93 = vadd.f32 %v89, 3.2e-05
    %v94 = vrsqrt.pop %v93
    %v95 = vadd.f32 %v92, 3.2e-05
    %v96 = vrsqrt.pop %v95
    %v97 = vsel %vm85, %v94, %v96
    %v98 = vmul.f32 %v82, %v97
    %v99 = vpack.c.bf16 %v98, %v98
    %v100 = vld [vmem:[#allocation5] sm:$0xff]
    %v101 = vld [vmem:[#allocation5 + $0x8] sm:$0xff]
    %v102 = vld [vmem:[#allocation5 + $0x10] sm:$0xff]
    %v103 = vld [vmem:[#allocation5 + $0x18] sm:$0xff]
    %v104 = vld [vmem:[#allocation5 + $0x20] sm:$0xff]
    %v105 = vld [vmem:[#allocation5 + $0x28] sm:$0xff]
    %v106 = vld [vmem:[#allocation5 + $0x30] sm:$0xff]
    %v107 = vld [vmem:[#allocation5 + $0x38] sm:$0xff]
    %v108 = vld [vmem:[#allocation5 + $0x40] sm:$0xff]
    %v109 = vld [vmem:[#allocation5 + $0x48] sm:$0xff]
    %v110 = vld [vmem:[#allocation5 + $0x50] sm:$0xff]
    %v111 = vld [vmem:[#allocation5 + $0x58] sm:$0xff]
    %v112 = vld [vmem:[#allocation5 + $0x60] sm:$0xff]
    %v113 = vld [vmem:[#allocation5 + $0x68] sm:$0xff]
    %v114 = vld [vmem:[#allocation5 + $0x70] sm:$0xff]
    %v115 = vld [vmem:[#allocation5 + $0x78] sm:$0xff]
    %v116 = vld [vmem:[%s2] sm:$0x3]
    %v118 = vlaneseq
    %v119 = vshrl.u32 %v118, 7
    %v120 = vsub.s32 0, %v119
    %v121 = vrot.slane %v116, %v120
    %v122 = vlaneseq
    %v123 = vshrl.u32 %v122, 7
    %v124 = vsub.s32 1, %v123
    %v125 = vrot.slane %v116, %v124
    %v144 = vunpack.c.l.b16 %v100
    %v145 = vunpack.c.h.b16 %v100
    %v146 = vunpack.c.l.b16 %v101
    %v147 = vunpack.c.h.b16 %v101
    %v148 = vunpack.c.l.b16 %v102
    %v149 = vunpack.c.h.b16 %v102
    %v150 = vunpack.c.l.b16 %v103
    %v151 = vunpack.c.h.b16 %v103
    %v152 = vunpack.c.l.b16 %v104
    %v153 = vunpack.c.h.b16 %v104
    %v154 = vunpack.c.l.b16 %v105
    %v155 = vunpack.c.h.b16 %v105
    %v156 = vunpack.c.l.b16 %v106
    %v157 = vunpack.c.h.b16 %v106
    %v158 = vunpack.c.l.b16 %v107
    %v159 = vunpack.c.h.b16 %v107
    %v160 = vunpack.c.l.b16 %v108
    %v161 = vunpack.c.h.b16 %v108
    %v162 = vunpack.c.l.b16 %v109
    %v163 = vunpack.c.h.b16 %v109
    %v164 = vunpack.c.l.b16 %v110
    %v165 = vunpack.c.h.b16 %v110
    %v166 = vunpack.c.l.b16 %v111
    %v167 = vunpack.c.h.b16 %v111
    %v168 = vunpack.c.l.b16 %v112
    %v169 = vunpack.c.h.b16 %v112
    %v170 = vunpack.c.l.b16 %v113
    %v171 = vunpack.c.h.b16 %v113
    %v172 = vunpack.c.l.b16 %v114
    %v173 = vunpack.c.h.b16 %v114
    %v174 = vunpack.c.l.b16 %v115
    %v175 = vunpack.c.h.b16 %v115
    %v176 = vpack.c.b16 %v146, %v144
    %v177 = vpack.c.b16 %v147, %v145
    %v178 = vpack.c.b16 %v150, %v148
    %v179 = vpack.c.b16 %v151, %v149
    %v180 = vpack.c.b16 %v154, %v152
    %v181 = vpack.c.b16 %v155, %v153
    %v182 = vpack.c.b16 %v158, %v156
    %v183 = vpack.c.b16 %v159, %v157
    %v184 = vpack.c.b16 %v162, %v160
    %v185 = vpack.c.b16 %v163, %v161
    %v186 = vpack.c.b16 %v166, %v164
    %v187 = vpack.c.b16 %v167, %v165
    %v188 = vpack.c.b16 %v170, %v168
    %v189 = vpack.c.b16 %v171, %v169
    %v190 = vpack.c.b16 %v174, %v172
    %v191 = vpack.c.b16 %v175, %v173
    %208 = vmatprep.subr.bf16.mxu0 %v191
    %209 = vmatpush1.bf16.msra.mxu0 %v190
    %210 = vmatprep.subr.bf16.mxu0 %v189
    %211 = vmatpush1.bf16.msra.mxu0 %v188
    %212 = vmatprep.subr.bf16.mxu0 %v187
    %213 = vmatpush1.bf16.msra.mxu0 %v186
    %214 = vmatprep.subr.bf16.mxu0 %v185
    %215 = vmatpush1.bf16.msra.mxu0 %v184
    %216 = vmatprep.subr.bf16.mxu0 %v183
    %217 = vmatpush1.bf16.msra.mxu0 %v182
    %218 = vmatprep.subr.bf16.mxu0 %v181
    %219 = vmatpush1.bf16.msra.mxu0 %v180
    %220 = vmatprep.subr.bf16.mxu0 %v179
    %221 = vmatpush1.bf16.msra.mxu0 %v178
    %222 = vmatprep.subr.bf16.mxu0 %v177
    %223 = vmatpush1.bf16.msra.mxu0 %v176
    %224 = vmatprep.subr.bf16.mxu0 0
    %225 = vmatpush2.bf16.msra.mxu0 0
    %226 = vmatprep.subr.bf16.mxu0 0
    %227 = vmatpush2.bf16.msra.mxu0 0
    %228 = vmatprep.subr.bf16.mxu0 0
    %229 = vmatpush2.bf16.msra.mxu0 0
    %230 = vmatprep.subr.bf16.mxu0 0
    %231 = vmatpush2.bf16.msra.mxu0 0
    %232 = vmatprep.subr.bf16.mxu0 0
    %233 = vmatpush2.bf16.msra.mxu0 0
    %234 = vmatprep.subr.bf16.mxu0 0
    %235 = vmatpush2.bf16.msra.mxu0 0
    %236 = vmatprep.subr.bf16.mxu0 0
    %237 = vmatpush2.bf16.msra.mxu0 0
    %238 = vmatprep.subr.bf16.mxu0 0
    %239 = vmatpush2.bf16.msra.mxu0 0
    %240 = vmatprep.mubr.bf16.mxu0 0
    %241 = vmatmul.mubr.bf16.gmra.mxu0 %v99
    %v242 = vpop.f32.mrf.mxu0
    %v243 = vadd.f32 %v121, %v242
    %v244 = vpop.f32.mrf.mxu0
    %v245 = vadd.f32 %v125, %v244
    %v246 = vpop.f32.mrf.mxu0
    %v247 = vpop.f32.mrf.mxu0
    %248 = vdwg.mxu0
    %vm249 = vcmp.ge.f32.partialorder %v243, 0.0
    %vm250 = vcmp.ge.f32.partialorder %v245, 0.0
    %v251 = vmul.f32 %v243, 0.01
    %v252 = vmul.f32 %v245, 0.01
    %v253 = vsel %vm249, %v243, %v251
    %v254 = vsel %vm250, %v245, %v252
    %v255 = vmul.f32 %v253, %v254
    %v256 = vpack.c.bf16 %v255, %v255
    %v257 = vld [vmem:[#allocation7] sm:$0xf]
    %v258 = vld [vmem:[#allocation7 + $0x4] sm:$0xf]
    %v259 = vld [vmem:[#allocation7 + $0x8] sm:$0xf]
    %v260 = vld [vmem:[#allocation7 + $0xc] sm:$0xf]
    %v261 = vld [vmem:[#allocation7 + $0x10] sm:$0xf]
    %v262 = vld [vmem:[#allocation7 + $0x14] sm:$0xf]
    %v263 = vld [vmem:[#allocation7 + $0x18] sm:$0xf]
    %v264 = vld [vmem:[#allocation7 + $0x1c] sm:$0xf]
    %v265 = vld [vmem:[#allocation7 + $0x20] sm:$0xf]
    %v266 = vld [vmem:[#allocation7 + $0x24] sm:$0xf]
    %v267 = vld [vmem:[#allocation7 + $0x28] sm:$0xf]
    %v268 = vld [vmem:[#allocation7 + $0x2c] sm:$0xf]
    %v269 = vld [vmem:[#allocation7 + $0x30] sm:$0xf]
    %v270 = vld [vmem:[#allocation7 + $0x34] sm:$0xf]
    %v271 = vld [vmem:[#allocation7 + $0x38] sm:$0xf]
    %v272 = vld [vmem:[#allocation7 + $0x3c] sm:$0xf]
    %v273 = vld [vmem:[%s4] sm:$0x1]
    %v275 = vlaneseq
    %v276 = vshrl.u32 %v275, 7
    %v277 = vsub.s32 0, %v276
    %v278 = vrot.slane %v273, %v277
    %v296 = vunpack.c.l.b16 %v257
    %v297 = vunpack.c.l.b16 %v258
    %v298 = vunpack.c.l.b16 %v259
    %v299 = vunpack.c.l.b16 %v260
    %v300 = vunpack.c.l.b16 %v261
    %v301 = vunpack.c.l.b16 %v262
    %v302 = vunpack.c.l.b16 %v263
    %v303 = vunpack.c.l.b16 %v264
    %v304 = vunpack.c.l.b16 %v265
    %v305 = vunpack.c.l.b16 %v266
    %v306 = vunpack.c.l.b16 %v267
    %v307 = vunpack.c.l.b16 %v268
    %v308 = vunpack.c.l.b16 %v269
    %v309 = vunpack.c.l.b16 %v270
    %v310 = vunpack.c.l.b16 %v271
    %v311 = vunpack.c.l.b16 %v272
    %v312 = vpack.c.b16 %v297, %v296
    %v313 = vpack.c.b16 %v299, %v298
    %v314 = vpack.c.b16 %v301, %v300
    %v315 = vpack.c.b16 %v303, %v302
    %v316 = vpack.c.b16 %v305, %v304
    %v317 = vpack.c.b16 %v307, %v306
    %v318 = vpack.c.b16 %v309, %v308
    %v319 = vpack.c.b16 %v311, %v310
    %328 = vmatprep.subr.bf16.mxu0 0
    %329 = vmatpush1.bf16.msra.mxu0 %v319
    %330 = vmatprep.subr.bf16.mxu0 0
    %331 = vmatpush1.bf16.msra.mxu0 %v318
    %332 = vmatprep.subr.bf16.mxu0 0
    %333 = vmatpush1.bf16.msra.mxu0 %v317
    %334 = vmatprep.subr.bf16.mxu0 0
    %335 = vmatpush1.bf16.msra.mxu0 %v316
    %336 = vmatprep.subr.bf16.mxu0 0
    %337 = vmatpush1.bf16.msra.mxu0 %v315
    %338 = vmatprep.subr.bf16.mxu0 0
    %339 = vmatpush1.bf16.msra.mxu0 %v314
    %340 = vmatprep.subr.bf16.mxu0 0
    %341 = vmatpush1.bf16.msra.mxu0 %v313
    %342 = vmatprep.subr.bf16.mxu0 0
    %343 = vmatpush1.bf16.msra.mxu0 %v312
    %344 = vmatprep.subr.bf16.mxu0 0
    %345 = vmatpush2.bf16.msra.mxu0 0
    %346 = vmatprep.subr.bf16.mxu0 0
    %347 = vmatpush2.bf16.msra.mxu0 0
    %348 = vmatprep.subr.bf16.mxu0 0
    %349 = vmatpush2.bf16.msra.mxu0 0
    %350 = vmatprep.subr.bf16.mxu0 0
    %351 = vmatpush2.bf16.msra.mxu0 0
    %352 = vmatprep.subr.bf16.mxu0 0
    %353 = vmatpush2.bf16.msra.mxu0 0
    %354 = vmatprep.subr.bf16.mxu0 0
    %355 = vmatpush2.bf16.msra.mxu0 0
    %356 = vmatprep.subr.bf16.mxu0 0
    %357 = vmatpush2.bf16.msra.mxu0 0
    %358 = vmatprep.subr.bf16.mxu0 0
    %359 = vmatpush2.bf16.msra.mxu0 0
    %360 = vmatprep.mubr.bf16.mxu0 0
    %361 = vmatmul.mubr.bf16.gmra.mxu0 %v256
    %v362 = vpop.f32.mrf.mxu0
    %v363 = vadd.f32 %v278, %v362
    %v364 = vpop.f32.mrf.mxu0
    %v365 = vpop.f32.mrf.mxu0
    %v366 = vpop.f32.mrf.mxu0
    %367 = vdwg.mxu0
    %vm368 = vcmp.ge.f32.partialorder %v363, 0.0
    %v369 = vmul.f32 %v363, 0.01
    %v370 = vsel %vm368, %v363, %v369
    %v371 = vpack.c.bf16 %v370, %v370
    %v372 = vld [vmem:[#allocation8] sm:$0xf]
    %v373 = vld [vmem:[#allocation8 + $0x4] sm:$0xf]
    %v374 = vld [vmem:[#allocation8 + $0x8] sm:$0xf]
    %v375 = vld [vmem:[#allocation8 + $0xc] sm:$0xf]
    %v376 = vld [vmem:[#allocation8 + $0x10] sm:$0xf]
    %v377 = vld [vmem:[#allocation8 + $0x14] sm:$0xf]
    %v378 = vld [vmem:[#allocation8 + $0x18] sm:$0xf]
    %v379 = vld [vmem:[#allocation8 + $0x1c] sm:$0xf]
    %v380 = vld [vmem:[#allocation8 + $0x20] sm:$0xf]
    %v381 = vld [vmem:[#allocation8 + $0x24] sm:$0xf]
    %v382 = vld [vmem:[#allocation8 + $0x28] sm:$0xf]
    %v383 = vld [vmem:[#allocation8 + $0x2c] sm:$0xf]
    %v384 = vld [vmem:[#allocation8 + $0x30] sm:$0xf]
    %v385 = vld [vmem:[#allocation8 + $0x34] sm:$0xf]
    %v386 = vld [vmem:[#allocation8 + $0x38] sm:$0xf]
    %v387 = vld [vmem:[#allocation8 + $0x3c] sm:$0xf]
    %v388 = vld [vmem:[%s6] sm:$0x1]
    %v390 = vlaneseq
    %v391 = vshrl.u32 %v390, 7
    %v392 = vsub.s32 0, %v391
    %v393 = vrot.slane %v388, %v392
    %v411 = vunpack.c.l.b16 %v372
    %v412 = vunpack.c.l.b16 %v373
    %v413 = vunpack.c.l.b16 %v374
    %v414 = vunpack.c.l.b16 %v375
    %v415 = vunpack.c.l.b16 %v376
    %v416 = vunpack.c.l.b16 %v377
    %v417 = vunpack.c.l.b16 %v378
    %v418 = vunpack.c.l.b16 %v379
    %v419 = vunpack.c.l.b16 %v380
    %v420 = vunpack.c.l.b16 %v381
    %v421 = vunpack.c.l.b16 %v382
    %v422 = vunpack.c.l.b16 %v383
    %v423 = vunpack.c.l.b16 %v384
    %v424 = vunpack.c.l.b16 %v385
    %v425 = vunpack.c.l.b16 %v386
    %v426 = vunpack.c.l.b16 %v387
    %v427 = vpack.c.b16 %v412, %v411
    %v428 = vpack.c.b16 %v414, %v413
    %v429 = vpack.c.b16 %v416, %v415
    %v430 = vpack.c.b16 %v418, %v417
    %v431 = vpack.c.b16 %v420, %v419
    %v432 = vpack.c.b16 %v422, %v421
    %v433 = vpack.c.b16 %v424, %v423
    %v434 = vpack.c.b16 %v426, %v425
    %443 = vmatprep.subr.bf16.mxu0 0
    %444 = vmatpush1.bf16.msra.mxu0 %v434
    %445 = vmatprep.subr.bf16.mxu0 0
    %446 = vmatpush1.bf16.msra.mxu0 %v433
    %447 = vmatprep.subr.bf16.mxu0 0
    %448 = vmatpush1.bf16.msra.mxu0 %v432
    %449 = vmatprep.subr.bf16.mxu0 0
    %450 = vmatpush1.bf16.msra.mxu0 %v431
    %451 = vmatprep.subr.bf16.mxu0 0
    %452 = vmatpush1.bf16.msra.mxu0 %v430
    %453 = vmatprep.subr.bf16.mxu0 0
    %454 = vmatpush1.bf16.msra.mxu0 %v429
    %455 = vmatprep.subr.bf16.mxu0 0
    %456 = vmatpush1.bf16.msra.mxu0 %v428
    %457 = vmatprep.subr.bf16.mxu0 0
    %458 = vmatpush1.bf16.msra.mxu0 %v427
    %459 = vmatprep.subr.bf16.mxu0 0
    %460 = vmatpush2.bf16.msra.mxu0 0
    %461 = vmatprep.subr.bf16.mxu0 0
    %462 = vmatpush2.bf16.msra.mxu0 0
    %463 = vmatprep.subr.bf16.mxu0 0
    %464 = vmatpush2.bf16.msra.mxu0 0
    %465 = vmatprep.subr.bf16.mxu0 0
    %466 = vmatpush2.bf16.msra.mxu0 0
    %467 = vmatprep.subr.bf16.mxu0 0
    %468 = vmatpush2.bf16.msra.mxu0 0
    %469 = vmatprep.subr.bf16.mxu0 0
    %470 = vmatpush2.bf16.msra.mxu0 0
    %471 = vmatprep.subr.bf16.mxu0 0
    %472 = vmatpush2.bf16.msra.mxu0 0
    %473 = vmatprep.subr.bf16.mxu0 0
    %474 = vmatpush2.bf16.msra.mxu0 0
    %475 = vmatprep.mubr.bf16.mxu0 0
    %476 = vmatmul.mubr.bf16.gmra.mxu0 %v371
    %v477 = vpop.f32.mrf.mxu0
    %v478 = vadd.f32 %v393, %v477
    %v479 = vpop.f32.mrf.mxu0
    %v480 = vpop.f32.mrf.mxu0
    %v481 = vpop.f32.mrf.mxu0
    %482 = vdwg.mxu0
    %483 = vst [vmem:[#allocation10] sm:$0xff] %v478
    // Predicated region
    $region46: #{tpu_custom_call.1} parent=1 // pred_check
      _
    $region47: #{tpu_custom_call.1} parent=1 // pred_check_branch
      %485 = sbr.rel (0) target = $region49
    $region48: #{tpu_custom_call.1} parent=1 // pred_region
      %s487 = ssub.s32 128, 128
      %488 = vsyncadd [#allocation4], %s487
      %s490 = sshll.u32 [#allocation10], 4
      %s491 = int_to_ptr.vmem [resolvable:$true] %s490
      %493 = dma.vmem_to_hbm [thread:$0]  %s491, 128, %s7, [#allocation4]
    $region49: #{tpu_custom_call.1} parent=1 // pred_fallthru
      _
    // Predicated region
    $region50: #{tpu_custom_call.1} parent=1 // pred_check
      _
    $region51: #{tpu_custom_call.1} parent=1 // pred_check_branch
      %495 = sbr.rel (0) target = $region53
    $region52: #{tpu_custom_call.1} parent=1 // pred_region
      %496 = dma.done [#allocation4], 128
    $region53: #{tpu_custom_call.1} parent=1 // pred_fallthru
      _
    %497 = vsyncpa [#allocation3], 1
    %498 = vsyncpa [#allocation6], 1
    %499 = vsyncpa [#allocation9], 1
    %500 = vsyncpa [#allocation4], 1

</llo_original>
